<compile_context>
chip_gen: v7x
topology: tpu7x:2x2x1
jax: 0.10.0
libtpu: 0.0.40
codegen_flags: <defaults>
</compile_context>

<pallas_src>
import functools

import jax
import jax.numpy as jnp
from jax.experimental import pallas as pl
from jax.experimental.pallas import tpu as pltpu

EPS = 1e-12  # F.normalize eps


# ---------------------------------------------------------------------------
# Hardware / tiling helpers
# ---------------------------------------------------------------------------
def _tpu_vmem_capacity_bytes():
    try:
        return int(pltpu.get_tpu_info().vmem_capacity_bytes)
    except Exception:
        return 128 * 1024 * 1024  # v5e / v6e default


def _device_kind():
    try:
        return jax.devices()[0].device_kind.lower()
    except Exception:
        return ""


def _pick_tile_b(B, cap):
    """Largest divisor of B that is a multiple of 8 and <= cap; else B itself."""
    cap = min(cap, B)
    for t in range(cap, 7, -1):
        if B % t == 0 and t % 8 == 0:
            return t
    return B  # small / awkward B: single full-batch block (== full dim is legal)


def _align_tile_n(tn, N):
    """Align the streamed feature tile: 256 for the MXU when large, else 128/8."""
    tn = min(tn, N)
    if tn >= N:
        return N
    if tn >= 256:
        return tn - tn % 256
    if tn >= 128:
        return 128
    return max(8, (tn // 8) * 8)


def _vmem_estimate(tile_b, tn, D, x_bytes, f_bytes):
    """Rough VMEM footprint: double-buffered pipeline blocks + scratch + temps."""
    lane = 128
    feat_stream = 2 * tn * D * f_bytes            # streamed feature tile
    x_block = 2 * tile_b * D * x_bytes            # resident x block
    tgt_block = 2 * tile_b * D * f_bytes          # gathered target features
    small_blocks = 2 * tile_b * lane * 4 * 2      # ca block + output block (lane pad)
    scratch = tile_b * D * f_bytes + 3 * tile_b * lane * 4
    temporaries = 4 * tile_b * tn * 4             # logits / exp / mask f32 temps
    return feat_stream + x_block + tgt_block + small_blocks + scratch + temporaries


def _auto_tile_n(N, D, tile_b, x_bytes, f_bytes, budget, tn_cap=2048):
    """Largest 256-aligned feature tile that fits the VMEM budget (<= tn_cap)."""
    fixed = _vmem_estimate(tile_b, 0, D, x_bytes, f_bytes)
    per_tn = 2 * D * f_bytes + 4 * tile_b * 4
    avail = budget - fixed
    tn = avail // per_tn if avail > 0 else 8
    return _align_tile_n(max(8, min(int(tn), tn_cap)), N)


def _maybe_check_targets(targets, N):
    """Best-effort host-side range check (skipped when targets is a tracer)."""
    try:
        tmin = int(jnp.min(targets))
        tmax = int(jnp.max(targets))
    except Exception:  # ConcretizationTypeError etc. under jit tracing
        return
    assert 0 <= tmin and tmax < N, f"targets out of range [0, {N})"


# ---------------------------------------------------------------------------
# Fused kernel: normalize + matmul + online log-softmax cross-entropy
# ---------------------------------------------------------------------------
def _fused_kernel(x_ref, f_ref, tgtf_ref, ca_ref, out_ref,
                  xs_scr, m_scr, l_scr, tacc_scr,
                  *, inv_temp, n_total, tile_n, mask_tail):
    j = pl.program_id(1)
    nj = pl.num_programs(1)

    # ---- init (once per batch tile): hoisted L2-norm scale, pre-scaled x
    #      in the matmul dtype, target logit, and online-softmax state.
    @pl.when(j == 0)
    def _init():
        x32 = x_ref[...].astype(jnp.float32)
        sq = jnp.sum(x32 * x32, axis=1, keepdims=True)               # [tb, 1]
        # 1/max(||x||, eps) * 1/temp   (rsqrt goes to the EUP slot)
        scale = jax.lax.rsqrt(jnp.maximum(sq, EPS * EPS)) * inv_temp
        xs32 = x32 * scale                                           # [tb, D] f32
        # target logit once per batch tile: f32 row-dot with gathered features
        tacc_scr[...] = jnp.sum(xs32 * tgtf_ref[...].astype(jnp.float32),
                                axis=1, keepdims=True)
        xs_scr[...] = xs32.astype(xs_scr.dtype)                      # matmul operand
        m_scr[...] = jnp.full(m_scr.shape, -jnp.inf, dtype=m_scr.dtype)
        l_scr[...] = jnp.zeros(l_scr.shape, l_scr.dtype)

    # ---- MXU matmul: (tb, D) x (tn, D) -> (tb, tn), contracting D on both.
    logits = jax.lax.dot_general(xs_scr[...], f_ref[...],
                                 (((1,), (1,)), ((), ())),
                                 preferred_element_type=jnp.float32)

    if mask_tail:
        # Only emitted when tile_n does not divide N; the last feature tile is
        # padded with unspecified rows, so the mask must keep covering them
        # (jnp.where discards the garbage/NaN branch).
        col = jax.lax.broadcasted_iota(jnp.int32, logits.shape, 1) + j * tile_n
        logits = jnp.where(col < n_total, logits, -jnp.inf)

    # ---- online logsumexp update
    m_prev = m_scr[...]
    m_new = jnp.maximum(m_prev, jnp.max(logits, axis=1, keepdims=True))
    alpha = jnp.exp(m_prev - m_new)
    l_scr[...] = alpha * l_scr[...] + jnp.sum(jnp.exp(logits - m_new),
                                              axis=1, keepdims=True)
    m_scr[...] = m_new

    # ---- finalize: per-row weighted CE, written lane-dense (128 wide)
    @pl.when(j == nj - 1)
    def _finalize():
        lse = m_scr[...] + jnp.log(l_scr[...])
        per_row = (lse - tacc_scr[...]) * ca_ref[...]                # [tb, 1]
        out_ref[...] = jnp.broadcast_to(per_row, out_ref.shape)


def cluster_memory_loss(inputs, features, targets, temp, ca=None,
                        *, tile_n=None, tile_b=None):
    B, D = inputs.shape
    N, D2 = features.shape
    assert D == D2, "feature dim mismatch"
    _maybe_check_targets(targets, N)

    if ca is None:
        ca = jnp.ones((B,), jnp.float32)
    ca2d = ca.astype(jnp.float32).reshape(B, 1)
    # Host-side gather of the target rows (tiny [B, D]); the kernel uses it to
    # compute the target logit once per batch tile instead of per N step.
    tgt_feats = jnp.take(features, targets.astype(jnp.int32), axis=0)

    x_bytes = inputs.dtype.itemsize
    f_bytes = features.dtype.itemsize
    vmem_cap = _tpu_vmem_capacity_bytes()
    budget = int(0.70 * vmem_cap)     # leave headroom for compiler temporaries

    # tile_b: arithmetic-intensity lever (features are re-read B/tile_b times).
    tb_cap = 512
    if "v7" in _device_kind() and B >= 16:
        # keep >= 2 batch blocks so the parallel axis spans both TensorCores
        tb_cap = min(tb_cap, max(8, B // 2))
    tb = tile_b if tile_b is not None else _pick_tile_b(B, tb_cap)
    assert B % tb == 0, "tile_b must divide batch"

    if tile_n is not None:
        tn = _align_tile_n(int(tile_n), N)
    else:
        tn = _auto_tile_n(N, D, tb, x_bytes, f_bytes, budget)
        # if even a minimal feature tile does not fit, trade batch reuse for VMEM
        while tn < min(128, N) and tb > 8:
            new_tb = _pick_tile_b(B, max(8, tb // 2))
            if new_tb == tb:
                break
            tb = new_tb
            tn = _auto_tile_n(N, D, tb, x_bytes, f_bytes, budget)

    grid = (B // tb, pl.cdiv(N, tn))
    mask_tail = (N % tn) != 0

    est = _vmem_estimate(tb, tn, D, x_bytes, f_bytes)
    vmem_limit = int(min(int(0.9 * vmem_cap),
                         max(32 * 1024 * 1024, est + (8 << 20))))

    kernel = functools.partial(_fused_kernel, inv_temp=float(1.0 / temp),
                               n_total=N, tile_n=tn, mask_tail=mask_tail)

    cost = pl.CostEstimate(
        flops=2 * B * N * D,
        transcendentals=B * N,
        bytes_accessed=(B // tb) * N * D * f_bytes
                       + B * D * (x_bytes + f_bytes) + B * 128 * 4 + B * 4,
    )

    per_row = pl.pallas_call(
        kernel,
        out_shape=jax.ShapeDtypeStruct((B, 128), jnp.float32),
        grid_spec=pltpu.PrefetchScalarGridSpec(
            num_scalar_prefetch=0,
            grid=grid,
            in_specs=[
                pl.BlockSpec((tb, D), lambda i, j: (i, 0)),   # x: resident over N
                pl.BlockSpec((tn, D), lambda i, j: (j, 0)),   # features: streamed
                pl.BlockSpec((tb, D), lambda i, j: (i, 0)),   # features[targets]
                pl.BlockSpec((tb, 1), lambda i, j: (i, 0)),   # ca weights
            ],
            out_specs=pl.BlockSpec((tb, 128), lambda i, j: (i, 0)),
            scratch_shapes=[
                pltpu.VMEM((tb, D), features.dtype),   # pre-scaled x (matmul dtype)
                pltpu.VMEM((tb, 1), jnp.float32),      # running max
                pltpu.VMEM((tb, 1), jnp.float32),      # running sum-exp
                pltpu.VMEM((tb, 1), jnp.float32),      # target logit
            ],
        ),
        compiler_params=pltpu.CompilerParams(
            dimension_semantics=("parallel", "arbitrary"),
            vmem_limit_bytes=vmem_limit,
        ),
        cost_estimate=cost,
    )(inputs, features, tgt_feats, ca2d)

    return jnp.mean(per_row[:, 0])


# ---------------------------------------------------------------------------
# Module-equivalent wrapper
# ---------------------------------------------------------------------------
class ClusterMemorySharedR:
    """JAX/Pallas equivalent of ClusterMemory_shared_r forward pass."""

    def __init__(self, num_features, num_samples, temp=0.05, momentum=0.2,
                 use_hard=False, features=None):
        self.num_features = num_features
        self.num_samples = num_samples
        self.temp = temp
        self.momentum = momentum          # backward-only (cluster memory update)
        self.use_hard = use_hard          # CM vs CM_Hard differ only in backward
        if features is None:
            features = jnp.zeros((num_samples, num_features), jnp.float32)
        # May be stored as bf16 to halve HBM streaming; the kernel accumulates f32.
        self.features = features
        # buffer exists in the torch module but is unused in forward:
        self.features_d = jnp.zeros((num_samples, 3, num_features), jnp.float32)
        # TODO(synk): backward-only cluster-memory momentum update (CM/CM_Hard.backward)
        #             is not part of the forward pass and is not implemented here.

    def __call__(self, inputs, targets, ca=None, training_momentum=None, *,
                 tile_n=None, tile_b=None):
        # training_momentum only affects the backward memory update -> no-op here.
        return cluster_memory_loss(inputs, self.features, targets, self.temp,
                                   ca=ca, tile_n=tile_n, tile_b=tile_b)


# ---------------------------------------------------------------------------
# Pure-JAX reference for sanity check
# ---------------------------------------------------------------------------
def _reference(inputs, targets, features, temp, ca):
    norm = jnp.maximum(jnp.linalg.norm(inputs, axis=1, keepdims=True), EPS)
    xn = inputs / norm
    logits = xn @ features.astype(jnp.float32).T / temp
    lse = jax.scipy.special.logsumexp(logits, axis=1)
    tgt_logit = jnp.take_along_axis(logits, targets[:, None], axis=1)[:, 0]
    return jnp.mean((lse - tgt_logit) * ca)


if __name__ == "__main__":
    B = 8
    num_features = 32
    num_samples = 256
    temp = 0.05

    key = jax.random.PRNGKey(0)
    k_x, k_f, k_t, k_c = jax.random.split(key, 4)

    inputs = jax.random.normal(k_x, (B, num_features), jnp.float32)
    feats = jax.random.normal(k_f, (num_samples, num_features), jnp.float32)
    feats = feats / jnp.linalg.norm(feats, axis=1, keepdims=True)
    targets = jax.random.randint(k_t, (B,), 0, num_samples, jnp.int32)
    ca = jax.random.uniform(k_c, (B,), jnp.float32, 0.5, 1.5)

    mem = ClusterMemorySharedR(num_features, num_samples, temp=temp,
                               momentum=0.2, use_hard=False, features=feats)

    ones = jnp.ones((B,), jnp.float32)
    ref = _reference(inputs, targets, feats, temp, ones)
    ref_ca = _reference(inputs, targets, feats, temp, ca)

    # 1) default auto tiling (single full-N tile here), plain CE (ca=None)
    loss = jax.block_until_ready(mem(inputs, targets))
    assert jnp.allclose(loss, ref, rtol=1e-4, atol=1e-4), (loss, ref)

    # 2) multi-tile streaming softmax with tn | N (mask-free fast path)
    loss_t = jax.block_until_ready(mem(inputs, targets, tile_n=128))
    assert jnp.allclose(loss_t, ref, rtol=1e-4, atol=1e-4), (loss_t, ref)

    # 3) ca-weighted path with a tile that does NOT divide N (exercises masking)
    loss_ca = jax.block_until_ready(mem(inputs, targets, ca=ca, tile_n=96))
    assert jnp.allclose(loss_ca, ref_ca, rtol=1e-4, atol=1e-4), (loss_ca, ref_ca)

    # 4) bf16 feature storage (halved HBM stream, f32 accumulation) - loose tol
    mem_bf = ClusterMemorySharedR(num_features, num_samples, temp=temp,
                                  features=feats.astype(jnp.bfloat16))
    loss_bf = jax.block_until_ready(mem_bf(inputs, targets, ca=ca, tile_n=128))
    assert jnp.allclose(loss_bf, ref_ca, rtol=5e-2, atol=5e-2), (loss_bf, ref_ca)

    print("KERNEL_OK")
</pallas_src>

<mosaic_0001>
module attributes {stable_mosaic.version = 11 : i64} {
  func.func @_fused_kernel(%arg0: i32, %arg1: i32, %arg2: memref<8x32xf32, #tpu.memory_space<vmem>>, %arg3: memref<256x32xf32, #tpu.memory_space<vmem>>, %arg4: memref<8x32xf32, #tpu.memory_space<vmem>>, %arg5: memref<8x1xf32, #tpu.memory_space<vmem>>, %arg6: memref<8x128xf32, #tpu.memory_space<vmem>>, %arg7: memref<8x32xf32, #tpu.memory_space<vmem>>, %arg8: memref<8x1xf32, #tpu.memory_space<vmem>>, %arg9: memref<8x1xf32, #tpu.memory_space<vmem>>, %arg10: memref<8x1xf32, #tpu.memory_space<vmem>>) attributes {dimension_semantics = [#tpu.dimension_semantics<parallel>, #tpu.dimension_semantics<arbitrary>], iteration_bounds = array<i64: 1, 1>, scalar_prefetch = 0 : i64, scratch_operands = 4 : i64, tpu.core_type = #tpu.core_type<tc>, window_params = [{transform_indices = @transform_0, window_bounds = array<i64: 8, 32>}, {transform_indices = @transform_1, window_bounds = array<i64: 256, 32>}, {transform_indices = @transform_2, window_bounds = array<i64: 8, 32>}, {transform_indices = @transform_3, window_bounds = array<i64: 8, 1>}, {transform_indices = @transform_4, window_bounds = array<i64: 8, 128>}]} {
    %c0_i32 = arith.constant 0 : i32
    %0 = arith.cmpi eq, %arg1, %c0_i32 : i32
    %1 = arith.extui %0 : i1 to i32
    %c0_i32_0 = arith.constant 0 : i32
    %2 = arith.cmpi ne, %1, %c0_i32_0 : i32
    scf.if %2 {
      %c0_16 = arith.constant 0 : index
      %c0_17 = arith.constant 0 : index
      %25 = vector.load %arg2[%c0_16, %c0_17] : memref<8x32xf32, #tpu.memory_space<vmem>>, vector<8x32xf32>
      %26 = arith.mulf %25, %25 : vector<8x32xf32>
      %cst_18 = arith.constant dense<0.000000e+00> : vector<8xf32>
      %27 = vector.multi_reduction <add>, %26, %cst_18 [1] : vector<8x32xf32> to vector<8xf32>
      %28 = vector.shape_cast %27 : vector<8xf32> to vector<8x1xf32>
      %cst_19 = arith.constant 1.000000e-24 : f32
      %29 = vector.broadcast %cst_19 : f32 to vector<8x1xf32>
      %30 = arith.maximumf %28, %29 : vector<8x1xf32>
      %31 = math.rsqrt %30 : vector<8x1xf32>
      %cst_20 = arith.constant 2.000000e+01 : f32
      %32 = vector.broadcast %cst_20 : f32 to vector<8x1xf32>
      %33 = arith.mulf %31, %32 : vector<8x1xf32>
      %34 = vector.broadcast %33 : vector<8x1xf32> to vector<8x32xf32>
      %35 = arith.mulf %25, %34 : vector<8x32xf32>
      %c0_21 = arith.constant 0 : index
      %c0_22 = arith.constant 0 : index
      %36 = vector.load %arg4[%c0_21, %c0_22] : memref<8x32xf32, #tpu.memory_space<vmem>>, vector<8x32xf32>
      %37 = arith.mulf %35, %36 : vector<8x32xf32>
      %cst_23 = arith.constant dense<0.000000e+00> : vector<8xf32>
      %38 = vector.multi_reduction <add>, %37, %cst_23 [1] : vector<8x32xf32> to vector<8xf32>
      %39 = vector.shape_cast %38 : vector<8xf32> to vector<8x1xf32>
      %c0_24 = arith.constant 0 : index
      %c0_25 = arith.constant 0 : index
      %40 = vector.load %arg10[%c0_24, %c0_25] : memref<8x1xf32, #tpu.memory_space<vmem>>, vector<8x1xf32>
      tpu.vector_store %arg10[%c0_24, %c0_25], %39 {strides = array<i32>} : memref<8x1xf32, #tpu.memory_space<vmem>>, vector<8x1xf32>,
      %c0_26 = arith.constant 0 : index
      %c0_27 = arith.constant 0 : index
      %41 = vector.load %arg7[%c0_26, %c0_27] : memref<8x32xf32, #tpu.memory_space<vmem>>, vector<8x32xf32>
      tpu.vector_store %arg7[%c0_26, %c0_27], %35 {strides = array<i32>} : memref<8x32xf32, #tpu.memory_space<vmem>>, vector<8x32xf32>,
      %cst_28 = arith.constant 0xFF800000 : f32
      %42 = vector.broadcast %cst_28 : f32 to vector<8x1xf32>
      %c0_29 = arith.constant 0 : index
      %c0_30 = arith.constant 0 : index
      %43 = vector.load %arg8[%c0_29, %c0_30] : memref<8x1xf32, #tpu.memory_space<vmem>>, vector<8x1xf32>
      tpu.vector_store %arg8[%c0_29, %c0_30], %42 {strides = array<i32>} : memref<8x1xf32, #tpu.memory_space<vmem>>, vector<8x1xf32>,
      %cst_31 = arith.constant 0.000000e+00 : f32
      %44 = vector.broadcast %cst_31 : f32 to vector<8x1xf32>
      %c0_32 = arith.constant 0 : index
      %c0_33 = arith.constant 0 : index
      %45 = vector.load %arg9[%c0_32, %c0_33] : memref<8x1xf32, #tpu.memory_space<vmem>>, vector<8x1xf32>
      tpu.vector_store %arg9[%c0_32, %c0_33], %44 {strides = array<i32>} : memref<8x1xf32, #tpu.memory_space<vmem>>, vector<8x1xf32>,
    } else {
    }
    %c0 = arith.constant 0 : index
    %c0_1 = arith.constant 0 : index
    %3 = vector.load %arg7[%c0, %c0_1] : memref<8x32xf32, #tpu.memory_space<vmem>>, vector<8x32xf32>
    %c0_2 = arith.constant 0 : index
    %c0_3 = arith.constant 0 : index
    %4 = vector.load %arg3[%c0_2, %c0_3] : memref<256x32xf32, #tpu.memory_space<vmem>>, vector<256x32xf32>
    %cst = arith.constant dense<0.000000e+00> : vector<8x256xf32>
    %5 = tpu.matmul %3, %4, %cst {dimension_numbers = #tpu.dot_dimension_numbers<[1], [1], [0], [0], [0, 0, 1, 0], [], []>} : vector<8x32xf32>, vector<256x32xf32>, vector<8x256xf32> -> vector<8x256xf32>
    %c0_4 = arith.constant 0 : index
    %c0_5 = arith.constant 0 : index
    %6 = vector.load %arg8[%c0_4, %c0_5] : memref<8x1xf32, #tpu.memory_space<vmem>>, vector<8x1xf32>
    %cst_6 = arith.constant dense<0xFF800000> : vector<8xf32>
    %7 = vector.multi_reduction <maximumf>, %5, %cst_6 [1] : vector<8x256xf32> to vector<8xf32>
    %8 = vector.shape_cast %7 : vector<8xf32> to vector<8x1xf32>
    %9 = arith.maximumf %6, %8 : vector<8x1xf32>
    %10 = arith.subf %6, %9 : vector<8x1xf32>
    %11 = math.exp %10 : vector<8x1xf32>
    %c0_7 = arith.constant 0 : index
    %c0_8 = arith.constant 0 : index
    %12 = vector.load %arg9[%c0_7, %c0_8] : memref<8x1xf32, #tpu.memory_space<vmem>>, vector<8x1xf32>
    %13 = arith.mulf %11, %12 : vector<8x1xf32>
    %14 = vector.broadcast %9 : vector<8x1xf32> to vector<8x256xf32>
    %15 = arith.subf %5, %14 : vector<8x256xf32>
    %16 = math.exp %15 : vector<8x256xf32>
    %cst_9 = arith.constant dense<0.000000e+00> : vector<8xf32>
    %17 = vector.multi_reduction <add>, %16, %cst_9 [1] : vector<8x256xf32> to vector<8xf32>
    %18 = vector.shape_cast %17 : vector<8xf32> to vector<8x1xf32>
    %19 = arith.addf %13, %18 : vector<8x1xf32>
    %c0_10 = arith.constant 0 : index
    %c0_11 = arith.constant 0 : index
    %20 = vector.load %arg9[%c0_10, %c0_11] : memref<8x1xf32, #tpu.memory_space<vmem>>, vector<8x1xf32>
    tpu.vector_store %arg9[%c0_10, %c0_11], %19 {strides = array<i32>} : memref<8x1xf32, #tpu.memory_space<vmem>>, vector<8x1xf32>,
    %c0_12 = arith.constant 0 : index
    %c0_13 = arith.constant 0 : index
    %21 = vector.load %arg8[%c0_12, %c0_13] : memref<8x1xf32, #tpu.memory_space<vmem>>, vector<8x1xf32>
    tpu.vector_store %arg8[%c0_12, %c0_13], %9 {strides = array<i32>} : memref<8x1xf32, #tpu.memory_space<vmem>>, vector<8x1xf32>,
    %c0_i32_14 = arith.constant 0 : i32
    %22 = arith.cmpi eq, %arg1, %c0_i32_14 : i32
    %23 = arith.extui %22 : i1 to i32
    %c0_i32_15 = arith.constant 0 : i32
    %24 = arith.cmpi ne, %23, %c0_i32_15 : i32
    scf.if %24 {
      %c0_16 = arith.constant 0 : index
      %c0_17 = arith.constant 0 : index
      %25 = vector.load %arg8[%c0_16, %c0_17] : memref<8x1xf32, #tpu.memory_space<vmem>>, vector<8x1xf32>
      %c0_18 = arith.constant 0 : index
      %c0_19 = arith.constant 0 : index
      %26 = vector.load %arg9[%c0_18, %c0_19] : memref<8x1xf32, #tpu.memory_space<vmem>>, vector<8x1xf32>
      %27 = math.log %26 : vector<8x1xf32>
      %28 = arith.addf %25, %27 : vector<8x1xf32>
      %c0_20 = arith.constant 0 : index
      %c0_21 = arith.constant 0 : index
      %29 = vector.load %arg10[%c0_20, %c0_21] : memref<8x1xf32, #tpu.memory_space<vmem>>, vector<8x1xf32>
      %30 = arith.subf %28, %29 : vector<8x1xf32>
      %c0_22 = arith.constant 0 : index
      %c0_23 = arith.constant 0 : index
      %31 = vector.load %arg5[%c0_22, %c0_23] : memref<8x1xf32, #tpu.memory_space<vmem>>, vector<8x1xf32>
      %32 = arith.mulf %30, %31 : vector<8x1xf32>
      %33 = vector.shape_cast %32 : vector<8x1xf32> to vector<8x1xf32>
      %34 = vector.broadcast %33 : vector<8x1xf32> to vector<8x128xf32>
      %c0_24 = arith.constant 0 : index
      %c0_25 = arith.constant 0 : index
      %35 = vector.load %arg6[%c0_24, %c0_25] : memref<8x128xf32, #tpu.memory_space<vmem>>, vector<8x128xf32>
      tpu.vector_store %arg6[%c0_24, %c0_25], %34 {strides = array<i32>} : memref<8x128xf32, #tpu.memory_space<vmem>>, vector<8x128xf32>,
    } else {
    }
    return
  }
  func.func @transform_0(%arg0: i32, %arg1: i32) -> (i32, i32) {
    %c0_i32 = arith.constant 0 : i32
    %c0_i32_0 = arith.constant 0 : i32
    return %arg0, %c0_i32 : i32, i32
  }
  func.func @transform_1(%arg0: i32, %arg1: i32) -> (i32, i32) {
    %c0_i32 = arith.constant 0 : i32
    %c0_i32_0 = arith.constant 0 : i32
    return %arg1, %c0_i32 : i32, i32
  }
  func.func @transform_2(%arg0: i32, %arg1: i32) -> (i32, i32) {
    %c0_i32 = arith.constant 0 : i32
    %c0_i32_0 = arith.constant 0 : i32
    return %arg0, %c0_i32 : i32, i32
  }
  func.func @transform_3(%arg0: i32, %arg1: i32) -> (i32, i32) {
    %c0_i32 = arith.constant 0 : i32
    %c0_i32_0 = arith.constant 0 : i32
    return %arg0, %c0_i32 : i32, i32
  }
  func.func @transform_4(%arg0: i32, %arg1: i32) -> (i32, i32) {
    %c0_i32 = arith.constant 0 : i32
    %c0_i32_0 = arith.constant 0 : i32
    return %arg0, %c0_i32 : i32, i32
  }
}

</mosaic_0001>

<llo_original>
// kernel: tpu_custom_call.1
$region0: #{tpu_custom_call.1}
  #allocation0 [shape = 'u32[]', space=smem, size = 0x4, offset = 0x4, fixed_abs, tag = 'smem constant byte address 0x4 - core index']
  #allocation1 [shape = 'u32[144,128]{1,0:T(1,128)}', space=vmem, size = 0x12000, scoped, tag = 'internal scratch']
  #allocation2 [shape = 'f32[8,32]{1,0:T(8,128)}', space=vmem, size = 0x1000, scoped, tag = 'scratch operand']
  #allocation3 [shape = 'f32[8,1]{1,0:T(8,128)}', space=vmem, size = 0x1000, scoped, tag = 'scratch operand']
  #allocation4 [shape = 'f32[8,1]{1,0:T(8,128)}', space=vmem, size = 0x1000, scoped, tag = 'scratch operand']
  #allocation5 [shape = 'f32[8,1]{1,0:T(8,128)}', space=vmem, size = 0x1000, scoped, tag = 'scratch operand']
  %s0 = inlined_call_operand.vmem [shape: f32[8,32], index: 0, kind: input, shape index: {}]
  %s1 = inlined_call_operand.vmem [shape: f32[256,32], index: 1, kind: input, shape index: {}]
  %s2 = inlined_call_operand.vmem [shape: f32[8,32], index: 2, kind: input, shape index: {}]
  %s3 = inlined_call_operand.vmem [shape: f32[8,1], index: 3, kind: input, shape index: {}]
  %s4 = inlined_call_operand.hbm [shape: f32[8,128], index: 4, kind: output, shape index: {}]
  %s5 = sld [smem:[#allocation0]]
  $region34: #{tpu_custom_call.1} parent=0
    _
  %s7 = ssub.s32 1, %s5
  %s8 = scalar_select 0, %s7, %s5
  $region1: #{tpu_custom_call.1} parent=0
    #allocation6 [shape = 'u8[4096]{0}', space=vmem, size = 0x1000, scoped, tag = 'output window, operand 0, single buffered']
    #allocation7 [shape = 's32[1]{0}', space=sflag, size = 0x4, scoped, tag = 'scoped memory for tpu_custom_call.1']
    %9 = vsyncpa [#allocation7], 0
    // Predicated region
    $region2: #{tpu_custom_call.1} parent=1 // pred_check
      _
    $region3: #{tpu_custom_call.1} parent=1 // pred_check_branch
      %11 = sbr.rel (0) target = $region5
    $region4: #{tpu_custom_call.1} parent=1 // pred_region
      _
    $region5: #{tpu_custom_call.1} parent=1 // pred_fallthru
      _
    // Predicated region
    $region6: #{tpu_custom_call.1} parent=1 // pred_check
      _
    $region7: #{tpu_custom_call.1} parent=1 // pred_check_branch
      %13 = sbr.rel (0) target = $region9
    $region8: #{tpu_custom_call.1} parent=1 // pred_region
      _
    $region9: #{tpu_custom_call.1} parent=1 // pred_fallthru
      _
    // Predicated region
    $region10: #{tpu_custom_call.1} parent=1 // pred_check
      _
    $region11: #{tpu_custom_call.1} parent=1 // pred_check_branch
      %15 = sbr.rel (0) target = $region13
    $region12: #{tpu_custom_call.1} parent=1 // pred_region
      _
    $region13: #{tpu_custom_call.1} parent=1 // pred_fallthru
      _
    // Predicated region
    $region14: #{tpu_custom_call.1} parent=1 // pred_check
      _
    $region15: #{tpu_custom_call.1} parent=1 // pred_check_branch
      %17 = sbr.rel (0) target = $region17
    $region16: #{tpu_custom_call.1} parent=1 // pred_region
      _
    $region17: #{tpu_custom_call.1} parent=1 // pred_fallthru
      _
    %p18 = scmp.eq.s32.totalorder 0, 0
    // Predicated region
    $region18: #{tpu_custom_call.1} parent=1 // pred_check
      %p19 = pneg %p18
    $region19: #{tpu_custom_call.1} parent=1 // pred_check_branch
      %21 = sbr.rel (%p19) target = $region21
    $region20: #{tpu_custom_call.1} parent=1 // pred_region
      %v22 = vld [vmem:[%s0] sm:$0xff]
      %v23 = vmul.f32 %v22, %v22
      %vm24 = vcmask 261120
      %v25 = vsel %vm24, %v23, 0.0
      %26 = vadd.xlane.f32.xlu0 %v25
      %v27 = vpop.xlane.xlu0 %26
      %v28 = vmax.f32 %v27, 1e-24
      %v29 = vrsqrt.pop %v28
      %v30 = vmul.f32 %v29, 20.0
      %v31 = vmul.f32 %v22, %v30
      %v32 = vld [vmem:[%s2] sm:$0xff]
      %v33 = vmul.f32 %v31, %v32
      %v34 = vsel %vm24, %v33, 0.0
      %35 = vadd.xlane.f32.xlu0 %v34
      %v36 = vpop.xlane.xlu0 %35
      %vm37 = vcmask 7168
      %38 = vst.msk [vmem:[#allocation5] sm:$0xff] %vm37, %v36
      %39 = vst.msk [vmem:[#allocation2] sm:$0xff] %vm24, %v31
      %40 = vst.msk [vmem:[#allocation3] sm:$0xff] %vm37, -inf
      %41 = vst.msk [vmem:[#allocation4] sm:$0xff] %vm37, 0.0
    $region21: #{tpu_custom_call.1} parent=1 // pred_fallthru
      _
    %v42 = vld [vmem:[#allocation2] sm:$0xff]
    %v43 = vld [vmem:[%s1] sm:$0xff]
    %v44 = vld [vmem:[%s1 + $0x8] sm:$0xff]
    %v45 = vld [vmem:[%s1 + $0x10] sm:$0xff]
    %v46 = vld [vmem:[%s1 + $0x18] sm:$0xff]
    %v47 = vld [vmem:[%s1 + $0x20] sm:$0xff]
    %v48 = vld [vmem:[%s1 + $0x28] sm:$0xff]
    %v49 = vld [vmem:[%s1 + $0x30] sm:$0xff]
    %v50 = vld [vmem:[%s1 + $0x38] sm:$0xff]
    %v51 = vld [vmem:[%s1 + $0x40] sm:$0xff]
    %v52 = vld [vmem:[%s1 + $0x48] sm:$0xff]
    %v53 = vld [vmem:[%s1 + $0x50] sm:$0xff]
    %v54 = vld [vmem:[%s1 + $0x58] sm:$0xff]
    %v55 = vld [vmem:[%s1 + $0x60] sm:$0xff]
    %v56 = vld [vmem:[%s1 + $0x68] sm:$0xff]
    %v57 = vld [vmem:[%s1 + $0x70] sm:$0xff]
    %v58 = vld [vmem:[%s1 + $0x78] sm:$0xff]
    %v59 = vld [vmem:[%s1 + $0x80] sm:$0xff]
    %v60 = vld [vmem:[%s1 + $0x88] sm:$0xff]
    %v61 = vld [vmem:[%s1 + $0x90] sm:$0xff]
    %v62 = vld [vmem:[%s1 + $0x98] sm:$0xff]
    %v63 = vld [vmem:[%s1 + $0xa0] sm:$0xff]
    %v64 = vld [vmem:[%s1 + $0xa8] sm:$0xff]
    %v65 = vld [vmem:[%s1 + $0xb0] sm:$0xff]
    %v66 = vld [vmem:[%s1 + $0xb8] sm:$0xff]
    %v67 = vld [vmem:[%s1 + $0xc0] sm:$0xff]
    %v68 = vld [vmem:[%s1 + $0xc8] sm:$0xff]
    %v69 = vld [vmem:[%s1 + $0xd0] sm:$0xff]
    %v70 = vld [vmem:[%s1 + $0xd8] sm:$0xff]
    %v71 = vld [vmem:[%s1 + $0xe0] sm:$0xff]
    %v72 = vld [vmem:[%s1 + $0xe8] sm:$0xff]
    %v73 = vld [vmem:[%s1 + $0xf0] sm:$0xff]
    %v74 = vld [vmem:[%s1 + $0xf8] sm:$0xff]
    %vm75 = vcmask 261120
    %v77 = vsel %vm75, %v42, 0
    %v80 = vsel %vm75, %v43, 0
    %v83 = vsel %vm75, %v44, 0
    %v86 = vsel %vm75, %v45, 0
    %v89 = vsel %vm75, %v46, 0
    %v92 = vsel %vm75, %v47, 0
    %v95 = vsel %vm75, %v48, 0
    %v98 = vsel %vm75, %v49, 0
    %v101 = vsel %vm75, %v50, 0
    %v104 = vsel %vm75, %v51, 0
    %v107 = vsel %vm75, %v52, 0
    %v110 = vsel %vm75, %v53, 0
    %v113 = vsel %vm75, %v54, 0
    %v116 = vsel %vm75, %v55, 0
    %v119 = vsel %vm75, %v56, 0
    %v122 = vsel %vm75, %v57, 0
    %v125 = vsel %vm75, %v58, 0
    %v128 = vsel %vm75, %v59, 0
    %v131 = vsel %vm75, %v60, 0
    %v134 = vsel %vm75, %v61, 0
    %v137 = vsel %vm75, %v62, 0
    %v140 = vsel %vm75, %v63, 0
    %v143 = vsel %vm75, %v64, 0
    %v146 = vsel %vm75, %v65, 0
    %v149 = vsel %vm75, %v66, 0
    %v152 = vsel %vm75, %v67, 0
    %v155 = vsel %vm75, %v68, 0
    %v158 = vsel %vm75, %v69, 0
    %v161 = vsel %vm75, %v70, 0
    %v164 = vsel %vm75, %v71, 0
    %v167 = vsel %vm75, %v72, 0
    %v170 = vsel %vm75, %v73, 0
    %v173 = vsel %vm75, %v74, 0
    %175 = vmatprep.subr.mxu0 0.0
    %176 = vmatpush1.xpose.msra.mxu0 %v80
    %177 = vmatprep.subr.mxu0 0.0
    %178 = vmatpush1.xpose.msra.mxu0 %v83
    %179 = vmatprep.subr.mxu0 0.0
    %180 = vmatpush1.xpose.msra.mxu0 %v86
    %181 = vmatprep.subr.mxu0 0.0
    %182 = vmatpush1.xpose.msra.mxu0 %v89
    %183 = vmatprep.subr.mxu0 0.0
    %184 = vmatpush1.xpose.msra.mxu0 %v92
    %185 = vmatprep.subr.mxu0 0.0
    %186 = vmatpush1.xpose.msra.mxu0 %v95
    %187 = vmatprep.subr.mxu0 0.0
    %188 = vmatpush1.xpose.msra.mxu0 %v98
    %189 = vmatprep.subr.mxu0 0.0
    %190 = vmatpush1.xpose.msra.mxu0 %v101
    %191 = vmatprep.subr.mxu0 0.0
    %192 = vmatpush1.xpose.msra.mxu0 %v104
    %193 = vmatprep.subr.mxu0 0.0
    %194 = vmatpush1.xpose.msra.mxu0 %v107
    %195 = vmatprep.subr.mxu0 0.0
    %196 = vmatpush1.xpose.msra.mxu0 %v110
    %197 = vmatprep.subr.mxu0 0.0
    %198 = vmatpush1.xpose.msra.mxu0 %v113
    %199 = vmatprep.subr.mxu0 0.0
    %200 = vmatpush1.xpose.msra.mxu0 %v116
    %201 = vmatprep.subr.mxu0 0.0
    %202 = vmatpush1.xpose.msra.mxu0 %v119
    %203 = vmatprep.subr.mxu0 0.0
    %204 = vmatpush1.xpose.msra.mxu0 %v122
    %205 = vmatprep.subr.mxu0 0.0
    %206 = vmatpush1.xpose.msra.mxu0 %v125
    %207 = vmatprep.subr.mxu0 0.0
    %208 = vmatpush1.xpose.msra.mxu0 %v128
    %209 = vmatprep.subr.mxu0 0.0
    %210 = vmatpush1.xpose.msra.mxu0 %v131
    %211 = vmatprep.subr.mxu0 0.0
    %212 = vmatpush1.xpose.msra.mxu0 %v134
    %213 = vmatprep.subr.mxu0 0.0
    %214 = vmatpush1.xpose.msra.mxu0 %v137
    %215 = vmatprep.subr.mxu0 0.0
    %216 = vmatpush1.xpose.msra.mxu0 %v140
    %217 = vmatprep.subr.mxu0 0.0
    %218 = vmatpush1.xpose.msra.mxu0 %v143
    %219 = vmatprep.subr.mxu0 0.0
    %220 = vmatpush1.xpose.msra.mxu0 %v146
    %221 = vmatprep.subr.mxu0 0.0
    %222 = vmatpush1.xpose.msra.mxu0 %v149
    %223 = vmatprep.subr.mxu0 0.0
    %224 = vmatpush1.xpose.msra.mxu0 %v152
    %225 = vmatprep.subr.mxu0 0.0
    %226 = vmatpush1.xpose.msra.mxu0 %v155
    %227 = vmatprep.subr.mxu0 0.0
    %228 = vmatpush1.xpose.msra.mxu0 %v158
    %229 = vmatprep.subr.mxu0 0.0
    %230 = vmatpush1.xpose.msra.mxu0 %v161
    %231 = vmatprep.subr.mxu0 0.0
    %232 = vmatpush1.xpose.msra.mxu0 %v164
    %233 = vmatprep.subr.mxu0 0.0
    %234 = vmatpush1.xpose.msra.mxu0 %v167
    %235 = vmatprep.subr.mxu0 0.0
    %236 = vmatpush1.xpose.msra.mxu0 %v170
    %237 = vmatprep.subr.mxu0 0.0
    %238 = vmatpush1.xpose.msra.mxu0 %v173
    %239 = vmatprep.mubr.f32.mxu0 0.0
    %240 = vmatmul.mubr.f32.gmra.mrb[0].mxu0 %v77
    %v241 = vpop.f32.mrb[0].mxu0
    %v242 = vadd.f32 0.0, %v241
    %v243 = vpop.f32.mrb[0].mxu0
    %v244 = vadd.f32 0.0, %v243
    %245 = vdwg.mxu0
    %v246 = vld [vmem:[#allocation3] sm:$0xff]
    %v247 = vmax.f32 %v242, %v244
    %248 = vmax.xlane.f32.xlu0 %v247
    %v249 = vpop.xlane.xlu0 %248
    %v250 = vmax.f32 %v246, %v249
    %v251 = vsub.f32 %v246, %v250
    %v252 = vmul.f32 %v251, 1.442695
    %v253 = vpow.pop %v252
    %v254 = vld [vmem:[#allocation4] sm:$0xff]
    %v255 = vmul.f32 %v253, %v254
    %257 = vset.pattern.permute.xlu0 0
    %258 = vperm.xlu0 %257, %v250
    %v259 = vpop.permute.xlu0 %258
    %v261 = vsub.f32 %v242, %v259
    %v262 = vsub.f32 %v244, %v259
    %v263 = vmul.f32 %v261, 1.442695
    %v264 = vpow.pop %v263
    %v265 = vmul.f32 %v262, 1.442695
    %v266 = vpow.pop %v265
    %v267 = vadd.f32 %v264, %v266
    %268 = vadd.xlane.f32.xlu0 %v267
    %v269 = vpop.xlane.xlu0 %268
    %v270 = vadd.f32 %v255, %v269
    %vm271 = vcmask 7168
    %272 = vst.msk [vmem:[#allocation4] sm:$0xff] %vm271, %v270
    %273 = vst.msk [vmem:[#allocation3] sm:$0xff] %vm271, %v250
    // Predicated region
    $region22: #{tpu_custom_call.1} parent=1 // pred_check
      %p274 = pneg %p18
    $region23: #{tpu_custom_call.1} parent=1 // pred_check_branch
      %276 = sbr.rel (%p274) target = $region25
    $region24: #{tpu_custom_call.1} parent=1 // pred_region
      %v277 = vld [vmem:[#allocation3] sm:$0xff]
      %v278 = vld [vmem:[#allocation4] sm:$0xff]
      %v279 = vlog2.pop %v278
      %v280 = vmul.f32 %v279, 0.6931472
      %v281 = vadd.f32 %v277, %v280
      %v282 = vld [vmem:[#allocation5] sm:$0xff]
      %v283 = vsub.f32 %v281, %v282
      %v284 = vld [vmem:[%s3] sm:$0xff]
      %v285 = vmul.f32 %v283, %v284
      %287 = vset.pattern.permute.xlu0 0
      %288 = vperm.xlu0 %287, %v285
      %v289 = vpop.permute.xlu0 %288
      %291 = vst [vmem:[#allocation6] sm:$0xff] %v289
    $region25: #{tpu_custom_call.1} parent=1 // pred_fallthru
      _
    // Predicated region
    $region26: #{tpu_custom_call.1} parent=1 // pred_check
      _
    $region27: #{tpu_custom_call.1} parent=1 // pred_check_branch
      %293 = sbr.rel (0) target = $region29
    $region28: #{tpu_custom_call.1} parent=1 // pred_region
      %s295 = ssub.s32 128, 128
      %296 = vsyncadd [#allocation7], %s295
      %s298 = sshll.u32 [#allocation6], 4
      %s299 = int_to_ptr.vmem [resolvable:$true] %s298
      %301 = dma.vmem_to_hbm [thread:$0]  %s299, 128, %s4, [#allocation7]
    $region29: #{tpu_custom_call.1} parent=1 // pred_fallthru
      _
    // Predicated region
    $region30: #{tpu_custom_call.1} parent=1 // pred_check
      _
    $region31: #{tpu_custom_call.1} parent=1 // pred_check_branch
      %303 = sbr.rel (0) target = $region33
    $region32: #{tpu_custom_call.1} parent=1 // pred_region
      %304 = dma.done [#allocation7], 128
    $region33: #{tpu_custom_call.1} parent=1 // pred_fallthru
      _
    %305 = vsyncpa [#allocation7], 1

</llo_original>
